<compile_context>
chip_gen: v7x
topology: tpu7x:2x2x1
jax: 0.10.0
libtpu: 0.0.40
codegen_flags: <defaults>
</compile_context>

<pallas_src>
import functools

import jax
import jax.numpy as jnp
from jax.experimental import pallas as pl
from jax.experimental.pallas import tpu as pltpu

LATENT = 64
HIDDEN = LATENT // 2   # 32
BN_EPS = 1e-5


# ---------------------------------------------------------------------------
# VMEM / tiling helpers
# ---------------------------------------------------------------------------
def _vmem_capacity_bytes():
    """Physical VMEM per TensorCore; conservative 64 MiB (v7x) if the query fails."""
    try:
        cap = getattr(pltpu.get_tpu_info(), "vmem_capacity_bytes", None)
        if cap:
            return int(cap)
    except Exception:
        pass
    return 64 << 20


def _usable_vmem_bytes():
    return int(_vmem_capacity_bytes() * 0.85)


def _vmem_limit(*streamed_tile_bytes):
    """Limit for double-buffered streamed tiles + headroom, capped by hardware VMEM."""
    need = 2 * sum(streamed_tile_bytes) + (4 << 20)
    return int(min(max(need, 8 << 20), _usable_vmem_bytes()))


def _round_up(n, m):
    return ((n + m - 1) // m) * m


def _pick_batch_tile(batch):
    """Largest tile (amortizes per-step overhead) whose zero-padding overhead stays small."""
    for t in (8192, 4096, 2048, 1024, 512, 256, 128):
        if (-batch) % t <= max(batch // 8, 127):
            return t
    return 128


# ---------------------------------------------------------------------------
# Fused kernel: grid = (phase, batch tile)
#   phase 0: fc1 (MXU) -> resident lane-dense h scratch + batch-stat accumulation
#   phase 1: folded BN affine + ReLU + fc2 + sigmoid -> lane-dense (1, bt) output
# ---------------------------------------------------------------------------
def _fused_kernel(x_ref, w1_ref, g_ref, beta_ref, w2_ref, b2_ref, o_ref,
                  h_ref, sum_ref, sq_ref, scale_ref, shift_ref,
                  *, inv_batch, bt):
    p = pl.program_id(0)                       # phase
    j = pl.program_id(1)                       # batch tile
    off = pl.multiple_of(j * bt, 128)          # lane offset of this tile inside h scratch

    @pl.when(p == 0)
    def _fc1_and_stats():
        @pl.when(j == 0)
        def _init():
            sum_ref[...] = jnp.zeros_like(sum_ref)
            sq_ref[...] = jnp.zeros_like(sq_ref)

        # fc1 on the MXU, transposed so batch sits on the lane axis: (HIDDEN, bt).
        # b1 omitted: a per-feature constant cancels under BN's batch-mean subtraction.
        h = jax.lax.dot_general(
            w1_ref[...], x_ref[...],
            dimension_numbers=(((1,), (1,)), ((), ())),
            preferred_element_type=jnp.float32)
        h_ref[:, pl.ds(off, bt)] = h.astype(h_ref.dtype)

        # Per-feature sum / sum-of-squares over the batch axis on the MXU (f32 accum).
        ones = jnp.ones((bt, 1), jnp.float32)
        sum_ref[...] += jnp.dot(h, ones, preferred_element_type=jnp.float32)
        sq_ref[...] += jnp.dot(h * h, ones, preferred_element_type=jnp.float32)

    @pl.when(p == 1)
    def _bn_relu_fc2():
        @pl.when(j == 0)
        def _fold_bn_once():
            mean = sum_ref[...] * inv_batch
            var = sq_ref[...] * inv_batch - mean * mean   # biased (training-mode) variance
            scale = g_ref[...] * jax.lax.rsqrt(var + BN_EPS)
            scale_ref[...] = scale
            shift_ref[...] = beta_ref[...] - mean * scale

        h = h_ref[:, pl.ds(off, bt)].astype(jnp.float32)               # (HIDDEN, bt)
        h_act = jnp.maximum(h * scale_ref[...] + shift_ref[...], 0.0)  # folded BN + ReLU
        y = jnp.dot(w2_ref[...], h_act,
                    preferred_element_type=jnp.float32) + b2_ref[...]  # (1, bt)
        o_ref[...] = 0.5 * (jnp.tanh(0.5 * y) + 1.0)                   # sigmoid (EUP tanh)


# ---------------------------------------------------------------------------
# Fallback two-pass path (huge batches whose h scratch would not fit VMEM):
# lane-dense bf16 h round-trip through HBM.
# ---------------------------------------------------------------------------
def _fc1_stats_kernel(x_ref, w1_ref, h_ref, sum_ref, sq_ref):
    h = jax.lax.dot_general(
        w1_ref[...], x_ref[...],
        dimension_numbers=(((1,), (1,)), ((), ())),
        preferred_element_type=jnp.float32)          # (HIDDEN, bt) f32
    h_ref[...] = h.astype(h_ref.dtype)               # bf16 write (halves h traffic)

    @pl.when(pl.program_id(0) == 0)
    def _init():
        sum_ref[...] = jnp.zeros_like(sum_ref)
        sq_ref[...] = jnp.zeros_like(sq_ref)

    ones = jnp.ones((h.shape[1], 1), jnp.float32)
    sum_ref[...] += jnp.dot(h, ones, preferred_element_type=jnp.float32)
    sq_ref[...] += jnp.dot(h * h, ones, preferred_element_type=jnp.float32)


def _bn_fc2_kernel(h_ref, scale_ref, shift_ref, w2_ref, b2_ref, o_ref):
    h = h_ref[...].astype(jnp.float32)                               # (HIDDEN, bt)
    h_act = jnp.maximum(h * scale_ref[...] + shift_ref[...], 0.0)
    y = jnp.dot(w2_ref[...], h_act, preferred_element_type=jnp.float32) + b2_ref[...]
    o_ref[...] = 0.5 * (jnp.tanh(0.5 * y) + 1.0)


# ---------------------------------------------------------------------------
# Wrapper
# ---------------------------------------------------------------------------
def costnet_forward(x, w1, b1, gamma, beta, w2, b2, *,
                    compute_dtype=jnp.float32, force_two_pass=False):
    """x: (B, LATENT). PyTorch layouts: w1 (HIDDEN, LATENT), b1 (HIDDEN,), w2 (1, HIDDEN), b2 (1,)."""
    del b1  # cancels exactly under the BatchNorm batch-mean subtraction
    B = x.shape[0]
    bt = _pick_batch_tile(B)
    B_pad = _round_up(B, bt)
    n_tiles = B_pad // bt
    inv_batch = 1.0 / B   # padded rows produce h == 0, so they never enter the stats

    x = jnp.asarray(x, jnp.float32)
    if B_pad != B:
        x = jnp.pad(x, ((0, B_pad - B), (0, 0)))   # zero rows -> zero h (b1 dropped)
    xp = x.astype(compute_dtype)
    w1p = jnp.asarray(w1, jnp.float32).astype(compute_dtype)     # keep PyTorch (H, L) layout
    g2 = jnp.asarray(gamma, jnp.float32).reshape(HIDDEN, 1)
    be2 = jnp.asarray(beta, jnp.float32).reshape(HIDDEN, 1)
    w2p = jnp.asarray(w2, jnp.float32).reshape(1, HIDDEN)
    b2p = jnp.asarray(b2, jnp.float32).reshape(1, 1)

    in_isz = 2 if compute_dtype == jnp.bfloat16 else 4
    fused_need = (HIDDEN * B_pad * in_isz        # resident h scratch
                  + 2 * bt * LATENT * in_isz     # double-buffered x tiles
                  + 2 * bt * 4                   # double-buffered (1, bt) output tiles
                  + (4 << 20))                   # params + compiler headroom
    use_fused = (not force_two_pass) and (fused_need <= _usable_vmem_bytes())

    if use_fused:
        y = pl.pallas_call(
            functools.partial(_fused_kernel, inv_batch=inv_batch, bt=bt),
            out_shape=jax.ShapeDtypeStruct((1, B_pad), jnp.float32),
            grid=(2, n_tiles),                    # (phase, batch tile)
            in_specs=[
                # x is streamed in phase 0 only (phase 1 maps all steps to block 0: one
                # redundant tile fetch total, negligible).
                pl.BlockSpec((bt, LATENT), lambda p, j: (j * (1 - p), 0)),
                pl.BlockSpec((HIDDEN, LATENT), lambda p, j: (0, 0)),   # w1 resident
                pl.BlockSpec((HIDDEN, 1), lambda p, j: (0, 0)),        # gamma
                pl.BlockSpec((HIDDEN, 1), lambda p, j: (0, 0)),        # beta
                pl.BlockSpec((1, HIDDEN), lambda p, j: (0, 0)),        # w2
                pl.BlockSpec((1, 1), lambda p, j: (0, 0)),             # b2
            ],
            out_specs=pl.BlockSpec((1, bt), lambda p, j: (0, j * p)),  # lane-dense output
            scratch_shapes=[
                pltpu.VMEM((HIDDEN, B_pad), compute_dtype),   # resident h (never hits HBM)
                pltpu.VMEM((HIDDEN, 1), jnp.float32),          # sum(h)
                pltpu.VMEM((HIDDEN, 1), jnp.float32),          # sum(h*h)
                pltpu.VMEM((HIDDEN, 1), jnp.float32),          # folded BN scale
                pltpu.VMEM((HIDDEN, 1), jnp.float32),          # folded BN shift
            ],
            compiler_params=pltpu.CompilerParams(
                dimension_semantics=("arbitrary", "arbitrary"),
                vmem_limit_bytes=int(min(max(fused_need, 8 << 20), _usable_vmem_bytes())),
            ),
        )(xp, w1p, g2, be2, w2p, b2p)
        return y[:, :B].reshape(B, 1)

    # ---- fallback: two passes with a lane-dense bf16 h round-trip through HBM ----
    h_t, ssum, ssq = pl.pallas_call(
        _fc1_stats_kernel,
        out_shape=(
            jax.ShapeDtypeStruct((HIDDEN, B_pad), jnp.bfloat16),
            jax.ShapeDtypeStruct((HIDDEN, 1), jnp.float32),
            jax.ShapeDtypeStruct((HIDDEN, 1), jnp.float32),
        ),
        grid=(n_tiles,),
        in_specs=[
            pl.BlockSpec((bt, LATENT), lambda i: (i, 0)),
            pl.BlockSpec((HIDDEN, LATENT), lambda i: (0, 0)),          # resident weights
        ],
        out_specs=(
            pl.BlockSpec((HIDDEN, bt), lambda i: (0, i)),              # lane-dense h
            pl.BlockSpec((HIDDEN, 1), lambda i: (0, 0)),               # resident accumulators
            pl.BlockSpec((HIDDEN, 1), lambda i: (0, 0)),
        ),
        compiler_params=pltpu.CompilerParams(
            dimension_semantics=("arbitrary",),
            vmem_limit_bytes=_vmem_limit(bt * LATENT * in_isz, HIDDEN * bt * 2),
        ),
    )(xp, w1p)

    # Fold BN once in the wrapper (tiny (HIDDEN,1) math) instead of per tile.
    mean = ssum * inv_batch
    var = ssq * inv_batch - mean * mean
    scale = g2 * jax.lax.rsqrt(var + BN_EPS)
    shift = be2 - mean * scale

    y = pl.pallas_call(
        _bn_fc2_kernel,
        out_shape=jax.ShapeDtypeStruct((1, B_pad), jnp.float32),
        grid=(n_tiles,),
        in_specs=[
            pl.BlockSpec((HIDDEN, bt), lambda i: (0, i)),
            pl.BlockSpec((HIDDEN, 1), lambda i: (0, 0)),
            pl.BlockSpec((HIDDEN, 1), lambda i: (0, 0)),
            pl.BlockSpec((1, HIDDEN), lambda i: (0, 0)),
            pl.BlockSpec((1, 1), lambda i: (0, 0)),
        ],
        out_specs=pl.BlockSpec((1, bt), lambda i: (0, i)),
        compiler_params=pltpu.CompilerParams(
            dimension_semantics=("parallel",),
            vmem_limit_bytes=_vmem_limit(HIDDEN * bt * 2, bt * 4),
        ),
    )(h_t, scale, shift, w2p, b2p)
    return y[:, :B].reshape(B, 1)


# ---------------------------------------------------------------------------
# Pure-JAX reference + deterministic init
# ---------------------------------------------------------------------------
def init_params(key):
    k1, k2, k3, k4 = jax.random.split(key, 4)
    bound1 = 1.0 / (LATENT ** 0.5)
    bound2 = 1.0 / (HIDDEN ** 0.5)
    w1 = jax.random.uniform(k1, (HIDDEN, LATENT), jnp.float32, -bound1, bound1)
    b1 = jax.random.uniform(k2, (HIDDEN,), jnp.float32, -bound1, bound1)
    w2 = jax.random.uniform(k3, (1, HIDDEN), jnp.float32, -bound2, bound2)
    b2 = jax.random.uniform(k4, (1,), jnp.float32, -bound2, bound2)
    gamma = jnp.ones((HIDDEN,), jnp.float32)   # BatchNorm1d default weight
    beta = jnp.zeros((HIDDEN,), jnp.float32)   # BatchNorm1d default bias
    return w1, b1, gamma, beta, w2, b2


def reference_forward(x, w1, b1, gamma, beta, w2, b2):
    h = x @ w1.T + b1
    mean = jnp.mean(h, axis=0, keepdims=True)
    var = jnp.mean((h - mean) ** 2, axis=0, keepdims=True)
    h = (h - mean) / jnp.sqrt(var + BN_EPS) * gamma + beta
    h = jnp.maximum(h, 0.0)
    y = h @ w2.T + b2
    return jax.nn.sigmoid(y)


if __name__ == "__main__":
    key = jax.random.PRNGKey(0)
    kx, kp = jax.random.split(key)
    w1, b1, gamma, beta, w2, b2 = init_params(kp)

    # 1) small batch, fused f32 path (exact vs. reference)
    B = 8
    x = jax.random.normal(kx, (B, LATENT), jnp.float32)
    out = jax.block_until_ready(costnet_forward(x, w1, b1, gamma, beta, w2, b2))
    ref = reference_forward(x, w1, b1, gamma, beta, w2, b2)
    assert out.shape == (B, 1)
    assert jnp.allclose(out, ref, atol=2e-5, rtol=1e-5), "fused f32 mismatch"

    # 2) ragged batch (exercises zero-padding + multi-tile accumulation), fused f32
    B2 = 300
    x2 = jax.random.normal(jax.random.fold_in(kx, 1), (B2, LATENT), jnp.float32)
    out2 = jax.block_until_ready(costnet_forward(x2, w1, b1, gamma, beta, w2, b2))
    ref2 = reference_forward(x2, w1, b1, gamma, beta, w2, b2)
    assert out2.shape == (B2, 1)
    assert jnp.allclose(out2, ref2, atol=2e-5, rtol=1e-5), "ragged fused f32 mismatch"

    # 3) forced two-pass fallback (bf16 h round-trip) -- looser tolerance
    B3 = 256
    x3 = jax.random.normal(jax.random.fold_in(kx, 2), (B3, LATENT), jnp.float32)
    out3 = jax.block_until_ready(
        costnet_forward(x3, w1, b1, gamma, beta, w2, b2, force_two_pass=True))
    ref3 = reference_forward(x3, w1, b1, gamma, beta, w2, b2)
    assert out3.shape == (B3, 1)
    assert jnp.allclose(out3, ref3, atol=2e-2, rtol=0), "two-pass bf16-h mismatch"

    # 4) bf16 streamed inputs on the fused path -- looser tolerance
    out4 = jax.block_until_ready(
        costnet_forward(x3, w1, b1, gamma, beta, w2, b2, compute_dtype=jnp.bfloat16))
    assert jnp.allclose(out4, ref3, atol=2e-2, rtol=0), "fused bf16-input mismatch"

    print("KERNEL_OK")
</pallas_src>

<mosaic_0001>
module attributes {stable_mosaic.version = 11 : i64} {
  func.func @_fused_kernel(%arg0: i32, %arg1: i32, %arg2: memref<128x64xf32, #tpu.memory_space<vmem>>, %arg3: memref<32x64xf32, #tpu.memory_space<vmem>>, %arg4: memref<32x1xf32, #tpu.memory_space<vmem>>, %arg5: memref<32x1xf32, #tpu.memory_space<vmem>>, %arg6: memref<1x32xf32, #tpu.memory_space<vmem>>, %arg7: memref<1x1xf32, #tpu.memory_space<vmem>>, %arg8: memref<1x128xf32, #tpu.memory_space<vmem>>, %arg9: memref<32x128xf32, #tpu.memory_space<vmem>>, %arg10: memref<32x1xf32, #tpu.memory_space<vmem>>, %arg11: memref<32x1xf32, #tpu.memory_space<vmem>>, %arg12: memref<32x1xf32, #tpu.memory_space<vmem>>, %arg13: memref<32x1xf32, #tpu.memory_space<vmem>>) attributes {dimension_semantics = [#tpu.dimension_semantics<arbitrary>, #tpu.dimension_semantics<arbitrary>], iteration_bounds = array<i64: 2, 1>, scalar_prefetch = 0 : i64, scratch_operands = 5 : i64, tpu.core_type = #tpu.core_type<tc>, window_params = [{transform_indices = @transform_0, window_bounds = array<i64: 128, 64>}, {pipeline_mode = #tpu.pipeline_mode<synchronous>, transform_indices = @transform_1, window_bounds = array<i64: 32, 64>}, {pipeline_mode = #tpu.pipeline_mode<synchronous>, transform_indices = @transform_2, window_bounds = array<i64: 32, 1>}, {pipeline_mode = #tpu.pipeline_mode<synchronous>, transform_indices = @transform_3, window_bounds = array<i64: 32, 1>}, {pipeline_mode = #tpu.pipeline_mode<synchronous>, transform_indices = @transform_4, window_bounds = array<i64: 1, 32>}, {pipeline_mode = #tpu.pipeline_mode<synchronous>, transform_indices = @transform_5, window_bounds = array<i64: 1, 1>}, {transform_indices = @transform_6, window_bounds = array<i64: 1, 128>}]} {
    %c128_i32 = arith.constant 128 : i32
    %0 = arith.muli %arg1, %c128_i32 : i32
    %1 = tpu.assume_multiple %0, 128 : i32
    %c0_i32 = arith.constant 0 : i32
    %2 = arith.cmpi eq, %arg0, %c0_i32 : i32
    %3 = arith.extui %2 : i1 to i32
    %c0_i32_0 = arith.constant 0 : i32
    %4 = arith.cmpi ne, %3, %c0_i32_0 : i32
    scf.if %4 {
      %c0_i32_2 = arith.constant 0 : i32
      %8 = arith.cmpi eq, %arg1, %c0_i32_2 : i32
      %9 = arith.extui %8 : i1 to i32
      %c0_i32_3 = arith.constant 0 : i32
      %10 = arith.cmpi ne, %9, %c0_i32_3 : i32
      scf.if %10 {
        %cst_19 = arith.constant 0.000000e+00 : f32
        %26 = vector.broadcast %cst_19 : f32 to vector<32x1xf32>
        %c0_20 = arith.constant 0 : index
        %c0_21 = arith.constant 0 : index
        %27 = vector.load %arg10[%c0_20, %c0_21] : memref<32x1xf32, #tpu.memory_space<vmem>>, vector<32x1xf32>
        tpu.vector_store %arg10[%c0_20, %c0_21], %26 {strides = array<i32>} : memref<32x1xf32, #tpu.memory_space<vmem>>, vector<32x1xf32>,
        %cst_22 = arith.constant 0.000000e+00 : f32
        %28 = vector.broadcast %cst_22 : f32 to vector<32x1xf32>
        %c0_23 = arith.constant 0 : index
        %c0_24 = arith.constant 0 : index
        %29 = vector.load %arg11[%c0_23, %c0_24] : memref<32x1xf32, #tpu.memory_space<vmem>>, vector<32x1xf32>
        tpu.vector_store %arg11[%c0_23, %c0_24], %28 {strides = array<i32>} : memref<32x1xf32, #tpu.memory_space<vmem>>, vector<32x1xf32>,
      } else {
      }
      %c0 = arith.constant 0 : index
      %c0_4 = arith.constant 0 : index
      %11 = vector.load %arg3[%c0, %c0_4] : memref<32x64xf32, #tpu.memory_space<vmem>>, vector<32x64xf32>
      %c0_5 = arith.constant 0 : index
      %c0_6 = arith.constant 0 : index
      %12 = vector.load %arg2[%c0_5, %c0_6] : memref<128x64xf32, #tpu.memory_space<vmem>>, vector<128x64xf32>
      %cst = arith.constant dense<0.000000e+00> : vector<32x128xf32>
      %13 = tpu.matmul %11, %12, %cst {dimension_numbers = #tpu.dot_dimension_numbers<[1], [1], [0], [0], [0, 0, 1, 0], [], []>} : vector<32x64xf32>, vector<128x64xf32>, vector<32x128xf32> -> vector<32x128xf32>
      %c0_7 = arith.constant 0 : index
      %14 = arith.index_cast %1 : i32 to index
      %15 = vector.load %arg9[%c0_7, %14] : memref<32x128xf32, #tpu.memory_space<vmem>>, vector<32x128xf32>
      tpu.vector_store %arg9[%c0_7, %14], %13 {strides = array<i32>} : memref<32x128xf32, #tpu.memory_space<vmem>>, vector<32x128xf32>,
      %cst_8 = arith.constant 1.000000e+00 : f32
      %16 = vector.broadcast %cst_8 : f32 to vector<128x1xf32>
      %c0_9 = arith.constant 0 : index
      %c0_10 = arith.constant 0 : index
      %17 = vector.load %arg10[%c0_9, %c0_10] : memref<32x1xf32, #tpu.memory_space<vmem>>, vector<32x1xf32>
      %cst_11 = arith.constant dense<0.000000e+00> : vector<32x1xf32>
      %18 = tpu.matmul %13, %16, %cst_11 {dimension_numbers = #tpu.dot_dimension_numbers<[1], [0], [0], [1], [0, 0, 1, 1], [], []>} : vector<32x128xf32>, vector<128x1xf32>, vector<32x1xf32> -> vector<32x1xf32>
      %19 = arith.addf %17, %18 : vector<32x1xf32>
      %c0_12 = arith.constant 0 : index
      %c0_13 = arith.constant 0 : index
      %20 = vector.load %arg10[%c0_12, %c0_13] : memref<32x1xf32, #tpu.memory_space<vmem>>, vector<32x1xf32>
      tpu.vector_store %arg10[%c0_12, %c0_13], %19 {strides = array<i32>} : memref<32x1xf32, #tpu.memory_space<vmem>>, vector<32x1xf32>,
      %c0_14 = arith.constant 0 : index
      %c0_15 = arith.constant 0 : index
      %21 = vector.load %arg11[%c0_14, %c0_15] : memref<32x1xf32, #tpu.memory_space<vmem>>, vector<32x1xf32>
      %22 = arith.mulf %13, %13 : vector<32x128xf32>
      %cst_16 = arith.constant dense<0.000000e+00> : vector<32x1xf32>
      %23 = tpu.matmul %22, %16, %cst_16 {dimension_numbers = #tpu.dot_dimension_numbers<[1], [0], [0], [1], [0, 0, 1, 1], [], []>} : vector<32x128xf32>, vector<128x1xf32>, vector<32x1xf32> -> vector<32x1xf32>
      %24 = arith.addf %21, %23 : vector<32x1xf32>
      %c0_17 = arith.constant 0 : index
      %c0_18 = arith.constant 0 : index
      %25 = vector.load %arg11[%c0_17, %c0_18] : memref<32x1xf32, #tpu.memory_space<vmem>>, vector<32x1xf32>
      tpu.vector_store %arg11[%c0_17, %c0_18], %24 {strides = array<i32>} : memref<32x1xf32, #tpu.memory_space<vmem>>, vector<32x1xf32>,
    } else {
    }
    %c1_i32 = arith.constant 1 : i32
    %5 = arith.cmpi eq, %arg0, %c1_i32 : i32
    %6 = arith.extui %5 : i1 to i32
    %c0_i32_1 = arith.constant 0 : i32
    %7 = arith.cmpi ne, %6, %c0_i32_1 : i32
    scf.if %7 {
      %c0_i32_2 = arith.constant 0 : i32
      %8 = arith.cmpi eq, %arg1, %c0_i32_2 : i32
      %9 = arith.extui %8 : i1 to i32
      %c0_i32_3 = arith.constant 0 : i32
      %10 = arith.cmpi ne, %9, %c0_i32_3 : i32
      scf.if %10 {
        %c0_18 = arith.constant 0 : index
        %c0_19 = arith.constant 0 : index
        %34 = vector.load %arg10[%c0_18, %c0_19] : memref<32x1xf32, #tpu.memory_space<vmem>>, vector<32x1xf32>
        %cst_20 = arith.constant 1.250000e-01 : f32
        %35 = vector.broadcast %cst_20 : f32 to vector<32x1xf32>
        %36 = arith.mulf %34, %35 : vector<32x1xf32>
        %c0_21 = arith.constant 0 : index
        %c0_22 = arith.constant 0 : index
        %37 = vector.load %arg11[%c0_21, %c0_22] : memref<32x1xf32, #tpu.memory_space<vmem>>, vector<32x1xf32>
        %cst_23 = arith.constant 1.250000e-01 : f32
        %38 = vector.broadcast %cst_23 : f32 to vector<32x1xf32>
        %39 = arith.mulf %37, %38 : vector<32x1xf32>
        %40 = arith.mulf %36, %36 : vector<32x1xf32>
        %41 = arith.subf %39, %40 : vector<32x1xf32>
        %c0_24 = arith.constant 0 : index
        %c0_25 = arith.constant 0 : index
        %42 = vector.load %arg4[%c0_24, %c0_25] : memref<32x1xf32, #tpu.memory_space<vmem>>, vector<32x1xf32>
        %cst_26 = arith.constant 9.99999974E-6 : f32
        %43 = vector.broadcast %cst_26 : f32 to vector<32x1xf32>
        %44 = arith.addf %41, %43 : vector<32x1xf32>
        %45 = math.rsqrt %44 : vector<32x1xf32>
        %46 = arith.mulf %42, %45 : vector<32x1xf32>
        %c0_27 = arith.constant 0 : index
        %c0_28 = arith.constant 0 : index
        %47 = vector.load %arg12[%c0_27, %c0_28] : memref<32x1xf32, #tpu.memory_space<vmem>>, vector<32x1xf32>
        tpu.vector_store %arg12[%c0_27, %c0_28], %46 {strides = array<i32>} : memref<32x1xf32, #tpu.memory_space<vmem>>, vector<32x1xf32>,
        %c0_29 = arith.constant 0 : index
        %c0_30 = arith.constant 0 : index
        %48 = vector.load %arg5[%c0_29, %c0_30] : memref<32x1xf32, #tpu.memory_space<vmem>>, vector<32x1xf32>
        %49 = arith.mulf %36, %46 : vector<32x1xf32>
        %50 = arith.subf %48, %49 : vector<32x1xf32>
        %c0_31 = arith.constant 0 : index
        %c0_32 = arith.constant 0 : index
        %51 = vector.load %arg13[%c0_31, %c0_32] : memref<32x1xf32, #tpu.memory_space<vmem>>, vector<32x1xf32>
        tpu.vector_store %arg13[%c0_31, %c0_32], %50 {strides = array<i32>} : memref<32x1xf32, #tpu.memory_space<vmem>>, vector<32x1xf32>,
      } else {
      }
      %c0 = arith.constant 0 : index
      %11 = arith.index_cast %1 : i32 to index
      %12 = vector.load %arg9[%c0, %11] : memref<32x128xf32, #tpu.memory_space<vmem>>, vector<32x128xf32>
      %c0_4 = arith.constant 0 : index
      %c0_5 = arith.constant 0 : index
      %13 = vector.load %arg12[%c0_4, %c0_5] : memref<32x1xf32, #tpu.memory_space<vmem>>, vector<32x1xf32>
      %14 = vector.broadcast %13 : vector<32x1xf32> to vector<32x128xf32>
      %15 = arith.mulf %12, %14 : vector<32x128xf32>
      %c0_6 = arith.constant 0 : index
      %c0_7 = arith.constant 0 : index
      %16 = vector.load %arg13[%c0_6, %c0_7] : memref<32x1xf32, #tpu.memory_space<vmem>>, vector<32x1xf32>
      %17 = vector.broadcast %16 : vector<32x1xf32> to vector<32x128xf32>
      %18 = arith.addf %15, %17 : vector<32x128xf32>
      %cst = arith.constant 0.000000e+00 : f32
      %19 = vector.broadcast %cst : f32 to vector<32x128xf32>
      %20 = arith.maximumf %18, %19 : vector<32x128xf32>
      %c0_8 = arith.constant 0 : index
      %c0_9 = arith.constant 0 : index
      %21 = vector.load %arg6[%c0_8, %c0_9] : memref<1x32xf32, #tpu.memory_space<vmem>>, vector<1x32xf32>
      %cst_10 = arith.constant dense<0.000000e+00> : vector<1x128xf32>
      %22 = tpu.matmul %21, %20, %cst_10 {dimension_numbers = #tpu.dot_dimension_numbers<[1], [0], [0], [1], [0, 0, 1, 1], [], []>} : vector<1x32xf32>, vector<32x128xf32>, vector<1x128xf32> -> vector<1x128xf32>
      %c0_11 = arith.constant 0 : index
      %c0_12 = arith.constant 0 : index
      %23 = vector.load %arg7[%c0_11, %c0_12] : memref<1x1xf32, #tpu.memory_space<vmem>>, vector<1x1xf32>
      %24 = vector.broadcast %23 : vector<1x1xf32> to vector<1x128xf32>
      %25 = arith.addf %22, %24 : vector<1x128xf32>
      %cst_13 = arith.constant 5.000000e-01 : f32
      %26 = vector.broadcast %cst_13 : f32 to vector<1x128xf32>
      %27 = arith.mulf %26, %25 : vector<1x128xf32>
      %28 = math.tanh %27 : vector<1x128xf32>
      %cst_14 = arith.constant 1.000000e+00 : f32
      %29 = vector.broadcast %cst_14 : f32 to vector<1x128xf32>
      %30 = arith.addf %28, %29 : vector<1x128xf32>
      %cst_15 = arith.constant 5.000000e-01 : f32
      %31 = vector.broadcast %cst_15 : f32 to vector<1x128xf32>
      %32 = arith.mulf %31, %30 : vector<1x128xf32>
      %c0_16 = arith.constant 0 : index
      %c0_17 = arith.constant 0 : index
      %33 = vector.load %arg8[%c0_16, %c0_17] : memref<1x128xf32, #tpu.memory_space<vmem>>, vector<1x128xf32>
      tpu.vector_store %arg8[%c0_16, %c0_17], %32 {strides = array<i32>} : memref<1x128xf32, #tpu.memory_space<vmem>>, vector<1x128xf32>,
    } else {
    }
    return
  }
  func.func @transform_0(%arg0: i32, %arg1: i32) -> (i32, i32) {
    %c1_i32 = arith.constant 1 : i32
    %0 = arith.subi %c1_i32, %arg0 : i32
    %1 = arith.muli %arg1, %0 : i32
    %c0_i32 = arith.constant 0 : i32
    %c0_i32_0 = arith.constant 0 : i32
    return %1, %c0_i32 : i32, i32
  }
  func.func @transform_1(%arg0: i32, %arg1: i32) -> (i32, i32) {
    %c0_i32 = arith.constant 0 : i32
    %c0_i32_0 = arith.constant 0 : i32
    %c0_i32_1 = arith.constant 0 : i32
    return %c0_i32, %c0_i32_0 : i32, i32
  }
  func.func @transform_2(%arg0: i32, %arg1: i32) -> (i32, i32) {
    %c0_i32 = arith.constant 0 : i32
    %c0_i32_0 = arith.constant 0 : i32
    %c0_i32_1 = arith.constant 0 : i32
    return %c0_i32, %c0_i32_0 : i32, i32
  }
  func.func @transform_3(%arg0: i32, %arg1: i32) -> (i32, i32) {
    %c0_i32 = arith.constant 0 : i32
    %c0_i32_0 = arith.constant 0 : i32
    %c0_i32_1 = arith.constant 0 : i32
    return %c0_i32, %c0_i32_0 : i32, i32
  }
  func.func @transform_4(%arg0: i32, %arg1: i32) -> (i32, i32) {
    %c0_i32 = arith.constant 0 : i32
    %c0_i32_0 = arith.constant 0 : i32
    %c0_i32_1 = arith.constant 0 : i32
    return %c0_i32, %c0_i32_0 : i32, i32
  }
  func.func @transform_5(%arg0: i32, %arg1: i32) -> (i32, i32) {
    %c0_i32 = arith.constant 0 : i32
    %c0_i32_0 = arith.constant 0 : i32
    %c0_i32_1 = arith.constant 0 : i32
    return %c0_i32, %c0_i32_0 : i32, i32
  }
  func.func @transform_6(%arg0: i32, %arg1: i32) -> (i32, i32) {
    %0 = arith.muli %arg1, %arg0 : i32
    %c0_i32 = arith.constant 0 : i32
    %c0_i32_0 = arith.constant 0 : i32
    return %c0_i32, %0 : i32, i32
  }
}

</mosaic_0001>

<llo_original>
// kernel: tpu_custom_call.1
$region0: #{tpu_custom_call.1}
  #allocation0 [shape = 'u32[]', space=smem, size = 0x4, offset = 0x4, fixed_abs, tag = 'smem constant byte address 0x4 - core index']
  #allocation1 [shape = 'u32[144,128]{1,0:T(1,128)}', space=vmem, size = 0x12000, scoped, tag = 'internal scratch']
  #allocation2 [shape = 'f32[32,128]{1,0:T(8,128)}', space=vmem, size = 0x4000, scoped, tag = 'scratch operand']
  #allocation3 [shape = 'f32[32,1]{1,0:T(8,128)}', space=vmem, size = 0x4000, scoped, tag = 'scratch operand']
  #allocation4 [shape = 'f32[32,1]{1,0:T(8,128)}', space=vmem, size = 0x4000, scoped, tag = 'scratch operand']
  #allocation5 [shape = 'f32[32,1]{1,0:T(8,128)}', space=vmem, size = 0x4000, scoped, tag = 'scratch operand']
  #allocation6 [shape = 'f32[32,1]{1,0:T(8,128)}', space=vmem, size = 0x4000, scoped, tag = 'scratch operand']
  #allocation7 [shape = 'f32[1,1]{1,0:T(1,128)S(1)}', space=vmem, size = 0x200, scoped, tag = 'scoped memory for tpu_custom_call.1']
  %s0 = inlined_call_operand.vmem [shape: f32[128,64], index: 0, kind: input, shape index: {}]
  %s1 = inlined_call_operand.vmem [shape: f32[32,64], index: 1, kind: input, shape index: {}]
  %s2 = inlined_call_operand.vmem [shape: f32[32,1], index: 2, kind: input, shape index: {}]
  %s3 = inlined_call_operand.vmem [shape: f32[32,1], index: 3, kind: input, shape index: {}]
  %s4 = inlined_call_operand.vmem [shape: f32[1,32], index: 4, kind: input, shape index: {}]
  %s5 = inlined_call_operand.<no memory space> [shape: f32[1,1], index: 5, kind: input, shape index: {}]
  %s6 = inlined_call_operand.hbm [shape: f32[1,128], index: 6, kind: output, shape index: {}]
  %s7 = sld [smem:[#allocation0]]
  $region73: #{tpu_custom_call.1} parent=0
    _
  %s9 = ssub.s32 1, %s7
  %s10 = scalar_select 0, %s9, %s7
  %v11 = vstv %s5
  %12 = vst [vmem:[#allocation7] sm:$0x1] %v11
  $region1: #{tpu_custom_call.1} parent=0
    #allocation8 [shape = 'u8[1024]{0}', space=vmem, size = 0x400, scoped, tag = 'output window, operand 0']
    #allocation9 [shape = 's32[2]{0}', space=sflag, size = 0x8, scoped, tag = 'scoped memory for tpu_custom_call.1']
    %13 = vsyncpa [#allocation9], 0
    %s14 = scalar_lea.sflag [#allocation9], 1
    %15 = vsyncpa %s14, 0
    loop: start=0, step=1, limit=4
    $region2: #{tpu_custom_call.1} parent=1 // loop_pre_header
      _
    $region3: #{tpu_custom_call.1} parent=1 // loop_header
      %s17 = sphi 0, %s21
      %p18 = scmp.ge.s32.totalorder %s17, 4
      %s24 = sphi 0, %s36
      %s25 = sphi 0, %s32
      %s26 = sphi 0, %s24
      %s27 = sphi 0, %s25
      %s28 = sphi 0, %s26
      %s29 = sphi 0, %s27
      %s43 = sphi 0, %s45
      %s46 = sphi 0, %s43
      %s47 = sphi 0, %s46
      %s63 = sphi 0, %s47
      %s67 = sphi 0, %s67
      %s69 = sphi 0, %s67
      %s70 = sphi 0, %s69
      %s84 = sphi 0, %s70
      %s88 = sphi 0, %s88
      %s90 = sphi 0, %s88
      %s91 = sphi 0, %s90
      %s105 = sphi 0, %s91
      %s109 = sphi 0, %s109
      %s111 = sphi 0, %s109
      %s112 = sphi 0, %s111
      %s126 = sphi 0, %s112
      %s130 = sphi 0, %s130
      %s132 = sphi 0, %s130
      %s133 = sphi 0, %s132
      %s147 = sphi 0, %s133
      %s151 = sphi 0, %s151
      %s153 = sphi 0, %s151
      %s154 = sphi 0, %s153
      %s168 = sphi 0, %s154
      %s176 = sphi 0, %s178
      %s179 = sphi 0, %s176
      %s180 = sphi 0, %s179
      %s196 = sphi 0, %s180
    $region4: #{tpu_custom_call.1} parent=1 // loop_header_branch
      %20 = sbr.rel (%p18) target = $region8
    $region5: #{tpu_custom_call.1} parent=1 // loop_body
      %s22 = ssub.s32 %s17, 1
      %s23 = ssub.s32 %s17, 2
      %s30 = sadd.s32 1, %s25
      %p31 = scmp.ge.s32.totalorder %s30, 1
      %s32 = scalar_select %p31, 0, %s30
      %s33 = sadd.s32 1, %s24
      %s34 = scalar_select %p31, %s33, %s24
      %p35 = scmp.ge.s32.totalorder %s34, 2
      %s36 = scalar_select %p35, 0, %s34
      %s37 = ssub.s32 1, %s24
      %s38 = smul.u32 %s25, %s37
      %s39 = ssub.s32 1, %s36
      %s40 = smul.u32 %s32, %s39
      %s41 = ssub.s32 %s38, %s40
      %p42 = scmp.eq.s32.totalorder %s41, 0
      %s44 = sadd.s32 %s43, 1
      %s45 = scalar_select %p42, %s43, %s44
      %p48 = pneg %p42
      %p49 = scmp.eq.s32.totalorder %s17, 1
      %p50 = por %p48, %p49
      %p51 = scmp.ne.s32.totalorder %s43, %s46
      %p52 = scmp.eq.s32.totalorder %s17, 0
      %p53 = por %p51, %p52
      %p54 = scmp.ne.s32.totalorder %s43, %s46
      %p55 = scmp.eq.s32.totalorder %s22, 1
      %p56 = por %p54, %p55
      %p57 = scmp.ne.s32.totalorder %s46, %s47
      %p58 = scmp.eq.s32.totalorder %s22, 0
      %p59 = por %p57, %p58
      %p60 = scmp.ne.s32.totalorder %s46, %s47
      %p61 = scmp.eq.s32.totalorder %s23, 1
      %p62 = por %p60, %p61
      %p64 = scmp.ne.s32.totalorder %s47, %s63
      %p65 = scmp.eq.s32.totalorder %s23, 0
      %p66 = por %p64, %p65
      %s68 = sadd.s32 %s67, 1
      %p71 = scmp.eq.s32.totalorder %s17, 1
      %p72 = scmp.ne.s32.totalorder %s67, %s69
      %p73 = scmp.eq.s32.totalorder %s17, 0
      %p74 = por %p72, %p73
      %p75 = scmp.ne.s32.totalorder %s67, %s69
      %p76 = scmp.eq.s32.totalorder %s22, 1
      %p77 = por %p75, %p76
      %p78 = scmp.ne.s32.totalorder %s69, %s70
      %p79 = scmp.eq.s32.totalorder %s22, 0
      %p80 = por %p78, %p79
      %p81 = scmp.ne.s32.totalorder %s69, %s70
      %p82 = scmp.eq.s32.totalorder %s23, 1
      %p83 = por %p81, %p82
      %p85 = scmp.ne.s32.totalorder %s70, %s84
      %p86 = scmp.eq.s32.totalorder %s23, 0
      %p87 = por %p85, %p86
      %s89 = sadd.s32 %s88, 1
      %p92 = scmp.eq.s32.totalorder %s17, 1
      %p93 = scmp.ne.s32.totalorder %s88, %s90
      %p94 = scmp.eq.s32.totalorder %s17, 0
      %p95 = por %p93, %p94
      %p96 = scmp.ne.s32.totalorder %s88, %s90
      %p97 = scmp.eq.s32.totalorder %s22, 1
      %p98 = por %p96, %p97
      %p99 = scmp.ne.s32.totalorder %s90, %s91
      %p100 = scmp.eq.s32.totalorder %s22, 0
      %p101 = por %p99, %p100
      %p102 = scmp.ne.s32.totalorder %s90, %s91
      %p103 = scmp.eq.s32.totalorder %s23, 1
      %p104 = por %p102, %p103
      %p106 = scmp.ne.s32.totalorder %s91, %s105
      %p107 = scmp.eq.s32.totalorder %s23, 0
      %p108 = por %p106, %p107
      %s110 = sadd.s32 %s109, 1
      %p113 = scmp.eq.s32.totalorder %s17, 1
      %p114 = scmp.ne.s32.totalorder %s109, %s111
      %p115 = scmp.eq.s32.totalorder %s17, 0
      %p116 = por %p114, %p115
      %p117 = scmp.ne.s32.totalorder %s109, %s111
      %p118 = scmp.eq.s32.totalorder %s22, 1
      %p119 = por %p117, %p118
      %p120 = scmp.ne.s32.totalorder %s111, %s112
      %p121 = scmp.eq.s32.totalorder %s22, 0
      %p122 = por %p120, %p121
      %p123 = scmp.ne.s32.totalorder %s111, %s112
      %p124 = scmp.eq.s32.totalorder %s23, 1
      %p125 = por %p123, %p124
      %p127 = scmp.ne.s32.totalorder %s112, %s126
      %p128 = scmp.eq.s32.totalorder %s23, 0
      %p129 = por %p127, %p128
      %s131 = sadd.s32 %s130, 1
      %p134 = scmp.eq.s32.totalorder %s17, 1
      %p135 = scmp.ne.s32.totalorder %s130, %s132
      %p136 = scmp.eq.s32.totalorder %s17, 0
      %p137 = por %p135, %p136
      %p138 = scmp.ne.s32.totalorder %s130, %s132
      %p139 = scmp.eq.s32.totalorder %s22, 1
      %p140 = por %p138, %p139
      %p141 = scmp.ne.s32.totalorder %s132, %s133
      %p142 = scmp.eq.s32.totalorder %s22, 0
      %p143 = por %p141, %p142
      %p144 = scmp.ne.s32.totalorder %s132, %s133
      %p145 = scmp.eq.s32.totalorder %s23, 1
      %p146 = por %p144, %p145
      %p148 = scmp.ne.s32.totalorder %s133, %s147
      %p149 = scmp.eq.s32.totalorder %s23, 0
      %p150 = por %p148, %p149
      %s152 = sadd.s32 %s151, 1
      %p155 = scmp.eq.s32.totalorder %s17, 1
      %p156 = scmp.ne.s32.totalorder %s151, %s153
      %p157 = scmp.eq.s32.totalorder %s17, 0
      %p158 = por %p156, %p157
      %p159 = scmp.ne.s32.totalorder %s151, %s153
      %p160 = scmp.eq.s32.totalorder %s22, 1
      %p161 = por %p159, %p160
      %p162 = scmp.ne.s32.totalorder %s153, %s154
      %p163 = scmp.eq.s32.totalorder %s22, 0
      %p164 = por %p162, %p163
      %p165 = scmp.ne.s32.totalorder %s153, %s154
      %p166 = scmp.eq.s32.totalorder %s23, 1
      %p167 = por %p165, %p166
      %p169 = scmp.ne.s32.totalorder %s154, %s168
      %p170 = scmp.eq.s32.totalorder %s23, 0
      %p171 = por %p169, %p170
      %s172 = smul.u32 %s25, %s24
      %s173 = smul.u32 %s32, %s36
      %s174 = ssub.s32 %s172, %s173
      %p175 = scmp.eq.s32.totalorder %s174, 0
      %s177 = sadd.s32 %s176, 1
      %s178 = scalar_select %p175, %s176, %s177
      %p181 = pneg %p175
      %p182 = scmp.eq.s32.totalorder %s17, 1
      %p183 = por %p181, %p182
      %p184 = scmp.ne.s32.totalorder %s176, %s179
      %p185 = scmp.eq.s32.totalorder %s17, 0
      %p186 = por %p184, %p185
      %p187 = scmp.ne.s32.totalorder %s176, %s179
      %p188 = scmp.eq.s32.totalorder %s22, 1
      %p189 = por %p187, %p188
      %p190 = scmp.ne.s32.totalorder %s179, %s180
      %p191 = scmp.eq.s32.totalorder %s22, 0
      %p192 = por %p190, %p191
      %p193 = scmp.ne.s32.totalorder %s179, %s180
      %p194 = scmp.eq.s32.totalorder %s23, 1
      %p195 = por %p193, %p194
      %p197 = scmp.ne.s32.totalorder %s180, %s196
      %p198 = scmp.eq.s32.totalorder %s23, 0
      %p199 = por %p197, %p198
      %p200 = scmp.le.s32.totalorder 1, %s17
      %p201 = scmp.lt.s32.totalorder %s17, 3
      %p202 = pnand %p200, %p201
      %p203 = pneg %p202
      // Predicated region
      $region9: #{tpu_custom_call.1} parent=5 // pred_check
        _
      $region10: #{tpu_custom_call.1} parent=5 // pred_check_branch
        %205 = sbr.rel (%p202) target = $region12
      $region11: #{tpu_custom_call.1} parent=5 // pred_region
        %s206 = ssub.s32 %s17, 1
        // Predicated region
        $region13: #{tpu_custom_call.1} parent=11 // pred_check
          %p207 = pneg %p80
        $region14: #{tpu_custom_call.1} parent=11 // pred_check_branch
          %209 = sbr.rel (%p207) target = $region16
        $region15: #{tpu_custom_call.1} parent=11 // pred_region
          _
        $region16: #{tpu_custom_call.1} parent=11 // pred_fallthru
          _
        // Predicated region
        $region17: #{tpu_custom_call.1} parent=11 // pred_check
          %p210 = pneg %p101
        $region18: #{tpu_custom_call.1} parent=11 // pred_check_branch
          %212 = sbr.rel (%p210) target = $region20
        $region19: #{tpu_custom_call.1} parent=11 // pred_region
          _
        $region20: #{tpu_custom_call.1} parent=11 // pred_fallthru
          _
        // Predicated region
        $region21: #{tpu_custom_call.1} parent=11 // pred_check
          %p213 = pneg %p122
        $region22: #{tpu_custom_call.1} parent=11 // pred_check_branch
          %215 = sbr.rel (%p213) target = $region24
        $region23: #{tpu_custom_call.1} parent=11 // pred_region
          _
        $region24: #{tpu_custom_call.1} parent=11 // pred_fallthru
          _
        // Predicated region
        $region25: #{tpu_custom_call.1} parent=11 // pred_check
          %p216 = pneg %p143
        $region26: #{tpu_custom_call.1} parent=11 // pred_check_branch
          %218 = sbr.rel (%p216) target = $region28
        $region27: #{tpu_custom_call.1} parent=11 // pred_region
          _
        $region28: #{tpu_custom_call.1} parent=11 // pred_fallthru
          _
        // Predicated region
        $region29: #{tpu_custom_call.1} parent=11 // pred_check
          %p219 = pneg %p164
        $region30: #{tpu_custom_call.1} parent=11 // pred_check_branch
          %221 = sbr.rel (%p219) target = $region32
        $region31: #{tpu_custom_call.1} parent=11 // pred_region
          _
        $region32: #{tpu_custom_call.1} parent=11 // pred_fallthru
          _
      $region12: #{tpu_custom_call.1} parent=5 // pred_fallthru
        _
      %p222 = scmp.lt.s32.totalorder %s17, 2
      // Predicated region
      $region33: #{tpu_custom_call.1} parent=5 // pred_check
        %p223 = pneg %p222
      $region34: #{tpu_custom_call.1} parent=5 // pred_check_branch
        %225 = sbr.rel (%p223) target = $region36
      $region35: #{tpu_custom_call.1} parent=5 // pred_region
        // Predicated region
        $region37: #{tpu_custom_call.1} parent=35 // pred_check
          %p226 = pneg %p53
        $region38: #{tpu_custom_call.1} parent=35 // pred_check_branch
          %228 = sbr.rel (%p226) target = $region40
        $region39: #{tpu_custom_call.1} parent=35 // pred_region
          %s229 = ssub.s32 1, %s24
          %s230 = smul.u32 %s25, %s229
          %s231 = smul.u32 16, %s230
          %p232 = scmp.lt.s32.totalorder %s231, 15
          %s233 = scalar_select %p232, %s231, 15
          %s234 = smul.addr %s233, 8
          %s235 = scalar_lea.vmem %s0, %s234
          %s236 = ssub.s32 1, %s24
          %s237 = smul.u32 %s25, %s236
          %s238 = smul.u32 16, %s237
        $region40: #{tpu_custom_call.1} parent=35 // pred_fallthru
          _
      $region36: #{tpu_custom_call.1} parent=5 // pred_fallthru
        _
      %p239 = scmp.le.s32.totalorder 1, %s17
      %p240 = scmp.lt.s32.totalorder %s17, 3
      %p241 = pnand %p239, %p240
      %p242 = pneg %p241
      // Predicated region
      $region41: #{tpu_custom_call.1} parent=5 // pred_check
        _
      $region42: #{tpu_custom_call.1} parent=5 // pred_check_branch
        %244 = sbr.rel (%p241) target = $region44
      $region43: #{tpu_custom_call.1} parent=5 // pred_region
        %s245 = ssub.s32 %s17, 1
        %s246 = ssub.s32 1, %s26
        %s247 = smul.u32 %s27, %s246
        %s248 = smul.u32 16, %s247
        %p249 = scmp.lt.s32.totalorder %s248, 15
        %s250 = scalar_select %p249, %s248, 15
        %s251 = smul.addr %s250, 8
        %s252 = scalar_lea.vmem %s0, %s251
        %p253 = pneg %p59
        %p254 = pneg %p56
        %p255 = pneg %p80
        %p256 = pneg %p77
        %p257 = pneg %p101
        %p258 = pneg %p98
        %p259 = pneg %p122
        %p260 = pneg %p119
        %p261 = pneg %p143
        %p262 = pneg %p140
        %p263 = pneg %p164
        %p264 = pneg %p161
        %p265 = pneg %p192
        %p266 = pneg %p189
        %s267 = sand.u32 %s179, 1
        %s268 = scalar_lea.sflag [#allocation9], %s267
        %s269 = sand.u32 %s179, 1
        %s270 = scalar_lea.vmem [#allocation8], %s269
        %s271 = ssub.s32 1, %s26
        %s272 = smul.u32 %s27, %s271
        %s273 = smul.u32 16, %s272
        %p274 = scmp.lt.s32.totalorder %s273, 15
        %s275 = scalar_select %p274, %s273, 15
        %s276 = smul.addr %s275, 8
        %s277 = scalar_lea.vmem %s0, %s276
        %s278 = ssub.s32 1, %s26
        %s279 = smul.u32 %s27, %s278
        %s280 = smul.u32 16, %s279
        %s281 = smul.u32 %s27, %s26
        %s282 = smul.u32 %s27, 128
        %p283 = scmp.eq.s32.totalorder %s26, 0
        // Predicated region
        $region45: #{tpu_custom_call.1} parent=43 // pred_check
          %p284 = pneg %p283
        $region46: #{tpu_custom_call.1} parent=43 // pred_check_branch
          %286 = sbr.rel (%p284) target = $region48
        $region47: #{tpu_custom_call.1} parent=43 // pred_region
          %p287 = scmp.eq.s32.totalorder %s27, 0
          // Predicated region
          $region49: #{tpu_custom_call.1} parent=47 // pred_check
            %p288 = pneg %p287
          $region50: #{tpu_custom_call.1} parent=47 // pred_check_branch
            %290 = sbr.rel (%p288) target = $region52
          $region51: #{tpu_custom_call.1} parent=47 // pred_region
            %vm291 = vcmask 7168
            %292 = vst.msk [vmem:[#allocation3] sm:$0xff] %vm291, 0.0
            %293 = vst.msk [vmem:[#allocation3 + $0x8] sm:$0xff] %vm291, 0.0
            %294 = vst.msk [vmem:[#allocation3 + $0x10] sm:$0xff] %vm291, 0.0
            %295 = vst.msk [vmem:[#allocation3 + $0x18] sm:$0xff] %vm291, 0.0
            %296 = vst.msk [vmem:[#allocation4] sm:$0xff] %vm291, 0.0
            %297 = vst.msk [vmem:[#allocation4 + $0x8] sm:$0xff] %vm291, 0.0
            %298 = vst.msk [vmem:[#allocation4 + $0x10] sm:$0xff] %vm291, 0.0
            %299 = vst.msk [vmem:[#allocation4 + $0x18] sm:$0xff] %vm291, 0.0
          $region52: #{tpu_custom_call.1} parent=47 // pred_fallthru
            _
          %v300 = vld [vmem:[%s1] sm:$0xff]
          %v301 = vld [vmem:[%s1 + $0x8] sm:$0xff]
          %v302 = vld [vmem:[%s1 + $0x10] sm:$0xff]
          %v303 = vld [vmem:[%s1 + $0x18] sm:$0xff]
          %v304 = vld [vmem:[%s277] sm:$0xff]
          %v305 = vld [vmem:[%s277 + $0x8] sm:$0xff]
          %v306 = vld [vmem:[%s277 + $0x10] sm:$0xff]
          %v307 = vld [vmem:[%s277 + $0x18] sm:$0xff]
          %v308 = vld [vmem:[%s277 + $0x20] sm:$0xff]
          %v309 = vld [vmem:[%s277 + $0x28] sm:$0xff]
          %v310 = vld [vmem:[%s277 + $0x30] sm:$0xff]
          %v311 = vld [vmem:[%s277 + $0x38] sm:$0xff]
          %v312 = vld [vmem:[%s277 + $0x40] sm:$0xff]
          %v313 = vld [vmem:[%s277 + $0x48] sm:$0xff]
          %v314 = vld [vmem:[%s277 + $0x50] sm:$0xff]
          %v315 = vld [vmem:[%s277 + $0x58] sm:$0xff]
          %v316 = vld [vmem:[%s277 + $0x60] sm:$0xff]
          %v317 = vld [vmem:[%s277 + $0x68] sm:$0xff]
          %v318 = vld [vmem:[%s277 + $0x70] sm:$0xff]
          %v319 = vld [vmem:[%s277 + $0x78] sm:$0xff]
          %vm320 = vcmask 523264
          %v322 = vsel %vm320, %v300, 0
          %v325 = vsel %vm320, %v301, 0
          %v328 = vsel %vm320, %v302, 0
          %v331 = vsel %vm320, %v303, 0
          %v334 = vsel %vm320, %v304, 0
          %v337 = vsel %vm320, %v305, 0
          %v340 = vsel %vm320, %v306, 0
          %v343 = vsel %vm320, %v307, 0
          %v346 = vsel %vm320, %v308, 0
          %v349 = vsel %vm320, %v309, 0
          %v352 = vsel %vm320, %v310, 0
          %v355 = vsel %vm320, %v311, 0
          %v358 = vsel %vm320, %v312, 0
          %v361 = vsel %vm320, %v313, 0
          %v364 = vsel %vm320, %v314, 0
          %v367 = vsel %vm320, %v315, 0
          %v370 = vsel %vm320, %v316, 0
          %v373 = vsel %vm320, %v317, 0
          %v376 = vsel %vm320, %v318, 0
          %v379 = vsel %vm320, %v319, 0
          %381 = vmatprep.subr.mxu0 0.0
          %382 = vmatpush1.xpose.msra.mxu0 %v334
          %383 = vmatprep.subr.mxu0 0.0
          %384 = vmatpush1.xpose.msra.mxu0 %v337
          %385 = vmatprep.subr.mxu0 0.0
          %386 = vmatpush1.xpose.msra.mxu0 %v340
          %387 = vmatprep.subr.mxu0 0.0
          %388 = vmatpush1.xpose.msra.mxu0 %v343
          %389 = vmatprep.subr.mxu0 0.0
          %390 = vmatpush1.xpose.msra.mxu0 %v346
          %391 = vmatprep.subr.mxu0 0.0
          %392 = vmatpush1.xpose.msra.mxu0 %v349
          %393 = vmatprep.subr.mxu0 0.0
          %394 = vmatpush1.xpose.msra.mxu0 %v352
          %395 = vmatprep.subr.mxu0 0.0
          %396 = vmatpush1.xpose.msra.mxu0 %v355
          %397 = vmatprep.subr.mxu0 0.0
          %398 = vmatpush1.xpose.msra.mxu0 %v358
          %399 = vmatprep.subr.mxu0 0.0
          %400 = vmatpush1.xpose.msra.mxu0 %v361
          %401 = vmatprep.subr.mxu0 0.0
          %402 = vmatpush1.xpose.msra.mxu0 %v364
          %403 = vmatprep.subr.mxu0 0.0
          %404 = vmatpush1.xpose.msra.mxu0 %v367
          %405 = vmatprep.subr.mxu0 0.0
          %406 = vmatpush1.xpose.msra.mxu0 %v370
          %407 = vmatprep.subr.mxu0 0.0
          %408 = vmatpush1.xpose.msra.mxu0 %v373
          %409 = vmatprep.subr.mxu0 0.0
          %410 = vmatpush1.xpose.msra.mxu0 %v376
          %411 = vmatprep.subr.mxu0 0.0
          %412 = vmatpush1.xpose.msra.mxu0 %v379
          %413 = vmatprep.subr.mxu0 0.0
          %414 = vmatpush1.xpose.msra.mxu0 0.0
          %415 = vmatprep.subr.mxu0 0.0
          %416 = vmatpush1.xpose.msra.mxu0 0.0
          %417 = vmatprep.subr.mxu0 0.0
          %418 = vmatpush1.xpose.msra.mxu0 0.0
          %419 = vmatprep.subr.mxu0 0.0
          %420 = vmatpush1.xpose.msra.mxu0 0.0
          %421 = vmatprep.subr.mxu0 0.0
          %422 = vmatpush1.xpose.msra.mxu0 0.0
          %423 = vmatprep.subr.mxu0 0.0
          %424 = vmatpush1.xpose.msra.mxu0 0.0
          %425 = vmatprep.subr.mxu0 0.0
          %426 = vmatpush1.xpose.msra.mxu0 0.0
          %427 = vmatprep.subr.mxu0 0.0
          %428 = vmatpush1.xpose.msra.mxu0 0.0
          %429 = vmatprep.subr.mxu0 0.0
          %430 = vmatpush1.xpose.msra.mxu0 0.0
          %431 = vmatprep.subr.mxu0 0.0
          %432 = vmatpush1.xpose.msra.mxu0 0.0
          %433 = vmatprep.subr.mxu0 0.0
          %434 = vmatpush1.xpose.msra.mxu0 0.0
          %435 = vmatprep.subr.mxu0 0.0
          %436 = vmatpush1.xpose.msra.mxu0 0.0
          %437 = vmatprep.subr.mxu0 0.0
          %438 = vmatpush1.xpose.msra.mxu0 0.0
          %439 = vmatprep.subr.mxu0 0.0
          %440 = vmatpush1.xpose.msra.mxu0 0.0
          %441 = vmatprep.subr.mxu0 0.0
          %442 = vmatpush1.xpose.msra.mxu0 0.0
          %443 = vmatprep.subr.mxu0 0.0
          %444 = vmatpush1.xpose.msra.mxu0 0.0
          %445 = vmatprep.mubr.f32.mxu0 0.0
          %446 = vmatmul.mubr.f32.gmra.mrb[0].mxu0 %v322
          %v447 = vpop.f32.mrb[0].mxu0
          %v448 = vadd.f32 0.0, %v447
          %v449 = vpop.f32.mrb[0].mxu0
          %450 = vmatprep.mubr.f32.mxu0 0.0
          %451 = vmatmul.mubr.f32.gmra.mrb[0].mxu0 %v325
          %v452 = vpop.f32.mrb[0].mxu0
          %v453 = vadd.f32 0.0, %v452
          %v454 = vpop.f32.mrb[0].mxu0
          %455 = vmatprep.mubr.f32.mxu0 0.0
          %456 = vmatmul.mubr.f32.gmra.mrb[0].mxu0 %v328
          %v457 = vpop.f32.mrb[0].mxu0
          %v458 = vadd.f32 0.0, %v457
          %v459 = vpop.f32.mrb[0].mxu0
          %460 = vmatprep.mubr.f32.mxu0 0.0
          %461 = vmatmul.mubr.f32.gmra.mrb[0].mxu0 %v331
          %v462 = vpop.f32.mrb[0].mxu0
          %v463 = vadd.f32 0.0, %v462
          %v464 = vpop.f32.mrb[0].mxu0
          %465 = vdwg.mxu0
          %s466 = sshra.s32 %s282, 7
          %s467 = sand.u32 %s282, 127
          %s468 = scalar_lea.vmem [#allocation2], %s466
          %469 = vst [vmem:[%s468] sm:$0xff] %v448
          %470 = vst [vmem:[%s468 + $0x8] sm:$0xff] %v453
          %471 = vst [vmem:[%s468 + $0x10] sm:$0xff] %v458
          %472 = vst [vmem:[%s468 + $0x18] sm:$0xff] %v463
          %v473 = vld [vmem:[#allocation3] sm:$0xff]
          %v474 = vld [vmem:[#allocation3 + $0x8] sm:$0xff]
          %v475 = vld [vmem:[#allocation3 + $0x10] sm:$0xff]
          %v476 = vld [vmem:[#allocation3 + $0x18] sm:$0xff]
          %477 = vmatprep.subr.mxu0 0.0
          %478 = vmatpush1.msra.mxu0 1.0
          %479 = vmatprep.subr.mxu0 0.0
          %480 = vmatpush1.msra.mxu0 1.0
          %481 = vmatprep.subr.mxu0 0.0
          %482 = vmatpush1.msra.mxu0 1.0
          %483 = vmatprep.subr.mxu0 0.0
          %484 = vmatpush1.msra.mxu0 1.0
          %485 = vmatprep.subr.mxu0 0.0
          %486 = vmatpush1.msra.mxu0 1.0
          %487 = vmatprep.subr.mxu0 0.0
          %488 = vmatpush1.msra.mxu0 1.0
          %489 = vmatprep.subr.mxu0 0.0
          %490 = vmatpush1.msra.mxu0 1.0
          %491 = vmatprep.subr.mxu0 0.0
          %492 = vmatpush1.msra.mxu0 1.0
          %493 = vmatprep.subr.mxu0 0.0
          %494 = vmatpush1.msra.mxu0 1.0
          %495 = vmatprep.subr.mxu0 0.0
          %496 = vmatpush1.msra.mxu0 1.0
          %497 = vmatprep.subr.mxu0 0.0
          %498 = vmatpush1.msra.mxu0 1.0
          %499 = vmatprep.subr.mxu0 0.0
          %500 = vmatpush1.msra.mxu0 1.0
          %501 = vmatprep.subr.mxu0 0.0
          %502 = vmatpush1.msra.mxu0 1.0
          %503 = vmatprep.subr.mxu0 0.0
          %504 = vmatpush1.msra.mxu0 1.0
          %505 = vmatprep.subr.mxu0 0.0
          %506 = vmatpush1.msra.mxu0 1.0
          %507 = vmatprep.subr.mxu0 0.0
          %508 = vmatpush1.msra.mxu0 1.0
          %509 = vmatprep.subr.mxu0 0.0
          %510 = vmatpush1.msra.mxu0 0.0
          %511 = vmatprep.subr.mxu0 0.0
          %512 = vmatpush1.msra.mxu0 0.0
          %513 = vmatprep.subr.mxu0 0.0
          %514 = vmatpush1.msra.mxu0 0.0
          %515 = vmatprep.subr.mxu0 0.0
          %516 = vmatpush1.msra.mxu0 0.0
          %517 = vmatprep.subr.mxu0 0.0
          %518 = vmatpush1.msra.mxu0 0.0
          %519 = vmatprep.subr.mxu0 0.0
          %520 = vmatpush1.msra.mxu0 0.0
          %521 = vmatprep.subr.mxu0 0.0
          %522 = vmatpush1.msra.mxu0 0.0
          %523 = vmatprep.subr.mxu0 0.0
          %524 = vmatpush1.msra.mxu0 0.0
          %525 = vmatprep.subr.mxu0 0.0
          %526 = vmatpush1.msra.mxu0 0.0
          %527 = vmatprep.subr.mxu0 0.0
          %528 = vmatpush1.msra.mxu0 0.0
          %529 = vmatprep.subr.mxu0 0.0
          %530 = vmatpush1.msra.mxu0 0.0
          %531 = vmatprep.subr.mxu0 0.0
          %532 = vmatpush1.msra.mxu0 0.0
          %533 = vmatprep.subr.mxu0 0.0
          %534 = vmatpush1.msra.mxu0 0.0
          %535 = vmatprep.subr.mxu0 0.0
          %536 = vmatpush1.msra.mxu0 0.0
          %537 = vmatprep.subr.mxu0 0.0
          %538 = vmatpush1.msra.mxu0 0.0
          %539 = vmatprep.subr.mxu0 0.0
          %540 = vmatpush1.msra.mxu0 0.0
          %541 = vmatprep.mubr.f32.mxu0 0.0
          %542 = vmatmul.mubr.f32.gmra.mrb[0].mxu0 %v448
          %v543 = vpop.f32.mrb[0].mxu0
          %v544 = vadd.f32 0.0, %v543
          %v545 = vpop.f32.mrb[0].mxu0
          %546 = vmatprep.mubr.f32.mxu0 0.0
          %547 = vmatmul.mubr.f32.gmra.mrb[0].mxu0 %v453
          %v548 = vpop.f32.mrb[0].mxu0
          %v549 = vadd.f32 0.0, %v548
          %v550 = vpop.f32.mrb[0].mxu0
          %551 = vmatprep.mubr.f32.mxu0 0.0
          %552 = vmatmul.mubr.f32.gmra.mrb[0].mxu0 %v458
          %v553 = vpop.f32.mrb[0].mxu0
          %v554 = vadd.f32 0.0, %v553
          %v555 = vpop.f32.mrb[0].mxu0
          %556 = vmatprep.mubr.f32.mxu0 0.0
          %557 = vmatmul.mubr.f32.gmra.mrb[0].mxu0 %v463
          %v558 = vpop.f32.mrb[0].mxu0
          %v559 = vadd.f32 0.0, %v558
          %v560 = vpop.f32.mrb[0].mxu0
          %561 = vdwg.mxu0
          %v562 = vadd.f32 %v473, %v544
          %v563 = vadd.f32 %v474, %v549
          %v564 = vadd.f32 %v475, %v554
          %v565 = vadd.f32 %v476, %v559
          %vm566 = vcmask 7168
          %567 = vst.msk [vmem:[#allocation3] sm:$0xff] %vm566, %v562
          %568 = vst.msk [vmem:[#allocation3 + $0x8] sm:$0xff] %vm566, %v563
          %569 = vst.msk [vmem:[#allocation3 + $0x10] sm:$0xff] %vm566, %v564
          %570 = vst.msk [vmem:[#allocation3 + $0x18] sm:$0xff] %vm566, %v565
          %v571 = vld [vmem:[#allocation4] sm:$0xff]
          %v572 = vld [vmem:[#allocation4 + $0x8] sm:$0xff]
          %v573 = vld [vmem:[#allocation4 + $0x10] sm:$0xff]
          %v574 = vld [vmem:[#allocation4 + $0x18] sm:$0xff]
          %v575 = vmul.f32 %v448, %v448
          %v576 = vmul.f32 %v453, %v453
          %v577 = vmul.f32 %v458, %v458
          %v578 = vmul.f32 %v463, %v463
          %579 = vmatprep.subr.mxu0 0.0
          %580 = vmatpush1.msra.mxu0 1.0
          %581 = vmatprep.subr.mxu0 0.0
          %582 = vmatpush1.msra.mxu0 1.0
          %583 = vmatprep.subr.mxu0 0.0
          %584 = vmatpush1.msra.mxu0 1.0
          %585 = vmatprep.subr.mxu0 0.0
          %586 = vmatpush1.msra.mxu0 1.0
          %587 = vmatprep.subr.mxu0 0.0
          %588 = vmatpush1.msra.mxu0 1.0
          %589 = vmatprep.subr.mxu0 0.0
          %590 = vmatpush1.msra.mxu0 1.0
          %591 = vmatprep.subr.mxu0 0.0
          %592 = vmatpush1.msra.mxu0 1.0
          %593 = vmatprep.subr.mxu0 0.0
          %594 = vmatpush1.msra.mxu0 1.0
          %595 = vmatprep.subr.mxu0 0.0
          %596 = vmatpush1.msra.mxu0 1.0
          %597 = vmatprep.subr.mxu0 0.0
          %598 = vmatpush1.msra.mxu0 1.0
          %599 = vmatprep.subr.mxu0 0.0
          %600 = vmatpush1.msra.mxu0 1.0
          %601 = vmatprep.subr.mxu0 0.0
          %602 = vmatpush1.msra.mxu0 1.0
          %603 = vmatprep.subr.mxu0 0.0
          %604 = vmatpush1.msra.mxu0 1.0
          %605 = vmatprep.subr.mxu0 0.0
          %606 = vmatpush1.msra.mxu0 1.0
          %607 = vmatprep.subr.mxu0 0.0
          %608 = vmatpush1.msra.mxu0 1.0
          %609 = vmatprep.subr.mxu0 0.0
          %610 = vmatpush1.msra.mxu0 1.0
          %611 = vmatprep.subr.mxu0 0.0
          %612 = vmatpush1.msra.mxu0 0.0
          %613 = vmatprep.subr.mxu0 0.0
          %614 = vmatpush1.msra.mxu0 0.0
          %615 = vmatprep.subr.mxu0 0.0
          %616 = vmatpush1.msra.mxu0 0.0
          %617 = vmatprep.subr.mxu0 0.0
          %618 = vmatpush1.msra.mxu0 0.0
          %619 = vmatprep.subr.mxu0 0.0
          %620 = vmatpush1.msra.mxu0 0.0
          %621 = vmatprep.subr.mxu0 0.0
          %622 = vmatpush1.msra.mxu0 0.0
          %623 = vmatprep.subr.mxu0 0.0
          %624 = vmatpush1.msra.mxu0 0.0
          %625 = vmatprep.subr.mxu0 0.0
          %626 = vmatpush1.msra.mxu0 0.0
          %627 = vmatprep.subr.mxu0 0.0
          %628 = vmatpush1.msra.mxu0 0.0
          %629 = vmatprep.subr.mxu0 0.0
          %630 = vmatpush1.msra.mxu0 0.0
          %631 = vmatprep.subr.mxu0 0.0
          %632 = vmatpush1.msra.mxu0 0.0
          %633 = vmatprep.subr.mxu0 0.0
          %634 = vmatpush1.msra.mxu0 0.0
          %635 = vmatprep.subr.mxu0 0.0
          %636 = vmatpush1.msra.mxu0 0.0
          %637 = vmatprep.subr.mxu0 0.0
          %638 = vmatpush1.msra.mxu0 0.0
          %639 = vmatprep.subr.mxu0 0.0
          %640 = vmatpush1.msra.mxu0 0.0
          %641 = vmatprep.subr.mxu0 0.0
          %642 = vmatpush1.msra.mxu0 0.0
          %643 = vmatprep.mubr.f32.mxu0 0.0
          %644 = vmatmul.mubr.f32.gmra.mrb[0].mxu0 %v575
          %v645 = vpop.f32.mrb[0].mxu0
          %v646 = vadd.f32 0.0, %v645
          %v647 = vpop.f32.mrb[0].mxu0
          %648 = vmatprep.mubr.f32.mxu0 0.0
          %649 = vmatmul.mubr.f32.gmra.mrb[0].mxu0 %v576
          %v650 = vpop.f32.mrb[0].mxu0
          %v651 = vadd.f32 0.0, %v650
          %v652 = vpop.f32.mrb[0].mxu0
          %653 = vmatprep.mubr.f32.mxu0 0.0
          %654 = vmatmul.mubr.f32.gmra.mrb[0].mxu0 %v577
          %v655 = vpop.f32.mrb[0].mxu0
          %v656 = vadd.f32 0.0, %v655
          %v657 = vpop.f32.mrb[0].mxu0
          %658 = vmatprep.mubr.f32.mxu0 0.0
          %659 = vmatmul.mubr.f32.gmra.mrb[0].mxu0 %v578
          %v660 = vpop.f32.mrb[0].mxu0
          %v661 = vadd.f32 0.0, %v660
          %v662 = vpop.f32.mrb[0].mxu0
          %663 = vdwg.mxu0
          %v664 = vadd.f32 %v571, %v646
          %v665 = vadd.f32 %v572, %v651
          %v666 = vadd.f32 %v573, %v656
          %v667 = vadd.f32 %v574, %v661
          %668 = vst.msk [vmem:[#allocation4] sm:$0xff] %vm566, %v664
          %669 = vst.msk [vmem:[#allocation4 + $0x8] sm:$0xff] %vm566, %v665
          %670 = vst.msk [vmem:[#allocation4 + $0x10] sm:$0xff] %vm566, %v666
          %671 = vst.msk [vmem:[#allocation4 + $0x18] sm:$0xff] %vm566, %v667
        $region48: #{tpu_custom_call.1} parent=43 // pred_fallthru
          _
        %p672 = scmp.eq.s32.totalorder %s26, 1
        // Predicated region
        $region53: #{tpu_custom_call.1} parent=43 // pred_check
          %p673 = pneg %p672
        $region54: #{tpu_custom_call.1} parent=43 // pred_check_branch
          %675 = sbr.rel (%p673) target = $region56
        $region55: #{tpu_custom_call.1} parent=43 // pred_region
          %p676 = scmp.eq.s32.totalorder %s27, 0
          // Predicated region
          $region57: #{tpu_custom_call.1} parent=55 // pred_check
            %p677 = pneg %p676
          $region58: #{tpu_custom_call.1} parent=55 // pred_check_branch
            %679 = sbr.rel (%p677) target = $region60
          $region59: #{tpu_custom_call.1} parent=55 // pred_region
            %v680 = vld [vmem:[#allocation3] sm:$0xff]
            %v681 = vld [vmem:[#allocation3 + $0x8] sm:$0xff]
            %v682 = vld [vmem:[#allocation3 + $0x10] sm:$0xff]
            %v683 = vld [vmem:[#allocation3 + $0x18] sm:$0xff]
            %v684 = vmul.f32 %v680, 0.125
            %v685 = vmul.f32 %v681, 0.125
            %v686 = vmul.f32 %v682, 0.125
            %v687 = vmul.f32 %v683, 0.125
            %v688 = vld [vmem:[#allocation4] sm:$0xff]
            %v689 = vld [vmem:[#allocation4 + $0x8] sm:$0xff]
            %v690 = vld [vmem:[#allocation4 + $0x10] sm:$0xff]
            %v691 = vld [vmem:[#allocation4 + $0x18] sm:$0xff]
            %v692 = vmul.f32 %v688, 0.125
            %v693 = vmul.f32 %v689, 0.125
            %v694 = vmul.f32 %v690, 0.125
            %v695 = vmul.f32 %v691, 0.125
            %v696 = vmul.f32 %v684, %v684
            %v697 = vmul.f32 %v685, %v685
            %v698 = vmul.f32 %v686, %v686
            %v699 = vmul.f32 %v687, %v687
            %v700 = vsub.f32 %v692, %v696
            %v701 = vsub.f32 %v693, %v697
            %v702 = vsub.f32 %v694, %v698
            %v703 = vsub.f32 %v695, %v699
            %v704 = vld [vmem:[%s2] sm:$0xff]
            %v705 = vld [vmem:[%s2 + $0x8] sm:$0xff]
            %v706 = vld [vmem:[%s2 + $0x10] sm:$0xff]
            %v707 = vld [vmem:[%s2 + $0x18] sm:$0xff]
            %v708 = vadd.f32 %v700, 1e-05
            %v709 = vadd.f32 %v701, 1e-05
            %v710 = vadd.f32 %v702, 1e-05
            %v711 = vadd.f32 %v703, 1e-05
            %v712 = vrsqrt.pop %v708
            %v713 = vrsqrt.pop %v709
            %v714 = vrsqrt.pop %v710
            %v715 = vrsqrt.pop %v711
            %v716 = vmul.f32 %v704, %v712
            %v717 = vmul.f32 %v705, %v713
            %v718 = vmul.f32 %v706, %v714
            %v719 = vmul.f32 %v707, %v715
            %vm720 = vcmask 7168
            %721 = vst.msk [vmem:[#allocation5] sm:$0xff] %vm720, %v716
            %722 = vst.msk [vmem:[#allocation5 + $0x8] sm:$0xff] %vm720, %v717
            %723 = vst.msk [vmem:[#allocation5 + $0x10] sm:$0xff] %vm720, %v718
            %724 = vst.msk [vmem:[#allocation5 + $0x18] sm:$0xff] %vm720, %v719
            %v725 = vld [vmem:[%s3] sm:$0xff]
            %v726 = vld [vmem:[%s3 + $0x8] sm:$0xff]
            %v727 = vld [vmem:[%s3 + $0x10] sm:$0xff]
            %v728 = vld [vmem:[%s3 + $0x18] sm:$0xff]
            %v729 = vmul.f32 %v684, %v716
            %v730 = vmul.f32 %v685, %v717
            %v731 = vmul.f32 %v686, %v718
            %v732 = vmul.f32 %v687, %v719
            %v733 = vsub.f32 %v725, %v729
            %v734 = vsub.f32 %v726, %v730
            %v735 = vsub.f32 %v727, %v731
            %v736 = vsub.f32 %v728, %v732
            %737 = vst.msk [vmem:[#allocation6] sm:$0xff] %vm720, %v733
            %738 = vst.msk [vmem:[#allocation6 + $0x8] sm:$0xff] %vm720, %v734
            %739 = vst.msk [vmem:[#allocation6 + $0x10] sm:$0xff] %vm720, %v735
            %740 = vst.msk [vmem:[#allocation6 + $0x18] sm:$0xff] %vm720, %v736
          $region60: #{tpu_custom_call.1} parent=55 // pred_fallthru
            _
          %s741 = sshra.s32 %s282, 7
          %s742 = sand.u32 %s282, 127
          %s743 = scalar_lea.vmem [#allocation2], %s741
          %v744 = vld [vmem:[%s743] sm:$0xff]
          %v745 = vld [vmem:[%s743 + $0x8] sm:$0xff]
          %v746 = vld [vmem:[%s743 + $0x10] sm:$0xff]
          %v747 = vld [vmem:[%s743 + $0x18] sm:$0xff]
          %v748 = vld [vmem:[#allocation5] sm:$0xff]
          %v749 = vld [vmem:[#allocation5 + $0x8] sm:$0xff]
          %v750 = vld [vmem:[#allocation5 + $0x10] sm:$0xff]
          %v751 = vld [vmem:[#allocation5 + $0x18] sm:$0xff]
          %753 = vset.pattern.permute.xlu0 0
          %754 = vperm.xlu0 %753, %v748
          %v755 = vpop.permute.xlu0 %754
          %758 = vset.pattern.permute.xlu0 0
          %759 = vperm.xlu0 %758, %v749
          %v760 = vpop.permute.xlu0 %759
          %763 = vset.pattern.permute.xlu0 0
          %764 = vperm.xlu0 %763, %v750
          %v765 = vpop.permute.xlu0 %764
          %768 = vset.pattern.permute.xlu0 0
          %769 = vperm.xlu0 %768, %v751
          %v770 = vpop.permute.xlu0 %769
          %v772 = vmul.f32 %v744, %v755
          %v773 = vmul.f32 %v745, %v760
          %v774 = vmul.f32 %v746, %v765
          %v775 = vmul.f32 %v747, %v770
          %v776 = vld [vmem:[#allocation6] sm:$0xff]
          %v777 = vld [vmem:[#allocation6 + $0x8] sm:$0xff]
          %v778 = vld [vmem:[#allocation6 + $0x10] sm:$0xff]
          %v779 = vld [vmem:[#allocation6 + $0x18] sm:$0xff]
          %781 = vset.pattern.permute.xlu0 0
          %782 = vperm.xlu0 %781, %v776
          %v783 = vpop.permute.xlu0 %782
          %786 = vset.pattern.permute.xlu0 0
          %787 = vperm.xlu0 %786, %v777
          %v788 = vpop.permute.xlu0 %787
          %791 = vset.pattern.permute.xlu0 0
          %792 = vperm.xlu0 %791, %v778
          %v793 = vpop.permute.xlu0 %792
          %796 = vset.pattern.permute.xlu0 0
          %797 = vperm.xlu0 %796, %v779
          %v798 = vpop.permute.xlu0 %797
          %v800 = vadd.f32 %v772, %v783
          %v801 = vadd.f32 %v773, %v788
          %v802 = vadd.f32 %v774, %v793
          %v803 = vadd.f32 %v775, %v798
          %v804 = vmax.f32 %v800, 0.0
          %v805 = vmax.f32 %v801, 0.0
          %v806 = vmax.f32 %v802, 0.0
          %v807 = vmax.f32 %v803, 0.0
          %v808 = vld [vmem:[%s4] sm:$0x1]
          %v809 = vld [vmem:[#allocation7] sm:$0x1]
          %811 = vset.pattern.permute.xlu0 0
          %812 = vperm.xlu0 %811, %v809
          %v813 = vpop.permute.xlu0 %812
          %v815 = vlaneseq
          %v816 = vshrl.u32 %v815, 7
          %v817 = vsub.s32 0, %v816
          %v818 = vrot.slane %v813, %v817
          %vm819 = vcmask 261120
          %v821 = vsel %vm819, %v808, 0
          %823 = vmatprep.subr.mxu0 0.0
          %824 = vmatpush1.msra.mxu0 %v804
          %825 = vmatprep.subr.mxu0 0.0
          %826 = vmatpush1.msra.mxu0 %v805
          %827 = vmatprep.subr.mxu0 0.0
          %828 = vmatpush1.msra.mxu0 %v806
          %829 = vmatprep.subr.mxu0 0.0
          %830 = vmatpush1.msra.mxu0 %v807
          %831 = vmatprep.subr.mxu0 0.0
          %832 = vmatpush1.msra.mxu0 0.0
          %833 = vmatprep.subr.mxu0 0.0
          %834 = vmatpush1.msra.mxu0 0.0
          %835 = vmatprep.subr.mxu0 0.0
          %836 = vmatpush1.msra.mxu0 0.0
          %837 = vmatprep.subr.mxu0 0.0
          %838 = vmatpush1.msra.mxu0 0.0
          %839 = vmatprep.subr.mxu0 0.0
          %840 = vmatpush1.msra.mxu0 0.0
          %841 = vmatprep.subr.mxu0 0.0
          %842 = vmatpush1.msra.mxu0 0.0
          %843 = vmatprep.subr.mxu0 0.0
          %844 = vmatpush1.msra.mxu0 0.0
          %845 = vmatprep.subr.mxu0 0.0
          %846 = vmatpush1.msra.mxu0 0.0
          %847 = vmatprep.subr.mxu0 0.0
          %848 = vmatpush1.msra.mxu0 0.0
          %849 = vmatprep.subr.mxu0 0.0
          %850 = vmatpush1.msra.mxu0 0.0
          %851 = vmatprep.subr.mxu0 0.0
          %852 = vmatpush1.msra.mxu0 0.0
          %853 = vmatprep.subr.mxu0 0.0
          %854 = vmatpush1.msra.mxu0 0.0
          %855 = vmatprep.subr.mxu0 0.0
          %856 = vmatpush1.msra.mxu0 0.0
          %857 = vmatprep.subr.mxu0 0.0
          %858 = vmatpush1.msra.mxu0 0.0
          %859 = vmatprep.subr.mxu0 0.0
          %860 = vmatpush1.msra.mxu0 0.0
          %861 = vmatprep.subr.mxu0 0.0
          %862 = vmatpush1.msra.mxu0 0.0
          %863 = vmatprep.subr.mxu0 0.0
          %864 = vmatpush1.msra.mxu0 0.0
          %865 = vmatprep.subr.mxu0 0.0
          %866 = vmatpush1.msra.mxu0 0.0
          %867 = vmatprep.subr.mxu0 0.0
          %868 = vmatpush1.msra.mxu0 0.0
          %869 = vmatprep.subr.mxu0 0.0
          %870 = vmatpush1.msra.mxu0 0.0
          %871 = vmatprep.subr.mxu0 0.0
          %872 = vmatpush1.msra.mxu0 0.0
          %873 = vmatprep.subr.mxu0 0.0
          %874 = vmatpush1.msra.mxu0 0.0
          %875 = vmatprep.subr.mxu0 0.0
          %876 = vmatpush1.msra.mxu0 0.0
          %877 = vmatprep.subr.mxu0 0.0
          %878 = vmatpush1.msra.mxu0 0.0
          %879 = vmatprep.subr.mxu0 0.0
          %880 = vmatpush1.msra.mxu0 0.0
          %881 = vmatprep.subr.mxu0 0.0
          %882 = vmatpush1.msra.mxu0 0.0
          %883 = vmatprep.subr.mxu0 0.0
          %884 = vmatpush1.msra.mxu0 0.0
          %885 = vmatprep.subr.mxu0 0.0
          %886 = vmatpush1.msra.mxu0 0.0
          %887 = vmatprep.mubr.f32.mxu0 0.0
          %888 = vmatmul.mubr.f32.gmra.mrb[0].mxu0 %v821
          %v889 = vpop.f32.mrb[0].mxu0
          %v890 = vadd.f32 %v818, %v889
          %v891 = vpop.f32.mrb[0].mxu0
          %892 = vdwg.mxu0
          %v893 = vmul.f32 %v890, 0.5
          %v894 = vtanh.pop %v893
          %v895 = vadd.f32 %v894, 1.0
          %v896 = vmul.f32 %v895, 0.5
          %897 = vst [vmem:[%s270] sm:$0x1] %v896
        $region56: #{tpu_custom_call.1} parent=43 // pred_fallthru
          _
        %s898 = sand.u32 %s179, 1
        %s899 = scalar_lea.sflag [#allocation9], %s898
        %s900 = sand.u32 %s179, 1
        %s901 = scalar_lea.vmem [#allocation8], %s900
        // Predicated region
        $region61: #{tpu_custom_call.1} parent=43 // pred_check
          %p902 = pneg %p189
        $region62: #{tpu_custom_call.1} parent=43 // pred_check_branch
          %904 = sbr.rel (%p902) target = $region64
        $region63: #{tpu_custom_call.1} parent=43 // pred_region
          %s905 = smul.u32 %s27, %s26
          %s907 = ssub.s32 16, 16
          %908 = vsyncadd %s899, %s907
          %s909 = smul.addr %s905, 16
          %s910 = scalar_lea.hbm %s6, %s909
          %s912 = sshll.u32 %s901, 4
          %s913 = int_to_ptr.vmem [resolvable:$true] %s912
          %915 = dma.vmem_to_hbm [thread:$0]  %s913, 16, %s910, %s899
        $region64: #{tpu_custom_call.1} parent=43 // pred_fallthru
          _
      $region44: #{tpu_custom_call.1} parent=5 // pred_fallthru
        _
      %p916 = scmp.le.s32.totalorder 2, %s17
      // Predicated region
      $region65: #{tpu_custom_call.1} parent=5 // pred_check
        %p917 = pneg %p916
      $region66: #{tpu_custom_call.1} parent=5 // pred_check_branch
        %919 = sbr.rel (%p917) target = $region68
      $region67: #{tpu_custom_call.1} parent=5 // pred_region
        %s920 = ssub.s32 %s17, 2
        // Predicated region
        $region69: #{tpu_custom_call.1} parent=67 // pred_check
          %p921 = pneg %p195
        $region70: #{tpu_custom_call.1} parent=67 // pred_check_branch
          %923 = sbr.rel (%p921) target = $region72
        $region71: #{tpu_custom_call.1} parent=67 // pred_region
          %s924 = sand.u32 %s180, 1
          %s925 = scalar_lea.sflag [#allocation9], %s924
          %s926 = sand.u32 %s180, 1
          %s927 = scalar_lea.vmem [#allocation8], %s926
          %928 = dma.done %s925, 16
        $region72: #{tpu_custom_call.1} parent=67 // pred_fallthru
          _
      $region68: #{tpu_custom_call.1} parent=5 // pred_fallthru
        _
    $region6: #{tpu_custom_call.1} parent=1 // loop_footer
      %s21 = sadd.s32 1, %s17
    $region7: #{tpu_custom_call.1} parent=1 // loop_footer_branch
      %16 = sbr.rel target = $region3
    $region8: #{tpu_custom_call.1} parent=1 // loop_exit
      _
    %929 = vsyncpa [#allocation9], 1
    %s930 = scalar_lea.sflag [#allocation9], 1
    %931 = vsyncpa %s930, 1

</llo_original>
